<compile_context>
chip_gen: v6e
topology: v6e:2x2x1
jax: 0.10.0
libtpu: 0.0.40
codegen_flags: <defaults>
</compile_context>

<pallas_src>
import functools

import numpy as np
import jax
import jax.numpy as jnp
from jax.experimental import pallas as pl
from jax.experimental.pallas import tpu as pltpu

BN_EPS = 1e-5
LANE = 128
SUBLANE = 8
NEG_BIG = -1e30


def _round_up(x, m):
    return (x + m - 1) // m * m


def textnet_kernel(x_ref, w_ref, w35_ref, v_ref, m_ref, y_ref, dec_ref, *,
                   n_real, p):
    """x_ref:   (n_pad, P)        f32   zero-padded input rows
       w_ref:   (4, P, P)         bf16  pre-transposed weights [w1, w2, w4, w6]
       w35_ref: (P, 2P)           bf16  fused [w3 | w5] (both consume `enc`)
       v_ref:   (16, P)           f32   rows: b1,g1,be1,b2,b3,g3,be3,b4,b5,b6,0..
       m_ref:   (nb_pad, n_pad,1) f32   additive bag mask (0 in-bag, -1e30 else)
       y_ref:   (nb_pad, P)       f32   sigmoid(per-bag max of fc)
       dec_ref: (n_pad, P)        f32   decoder output"""
    n_pad = x_ref.shape[0]
    inv_n = 1.0 / float(n_real)

    row_ids = jax.lax.broadcasted_iota(jnp.int32, (n_pad, 1), 0)
    row_mask = row_ids < n_real

    v = v_ref[...]                                   # (16, P) f32, loaded once

    def vec(i):                                      # static (1, P) row slice
        return v[i:i + 1, :]

    def linear(h, w):                                # bf16 MXU, f32 accumulate
        return jnp.dot(h.astype(jnp.bfloat16), w,
                       preferred_element_type=jnp.float32)

    def bn_relu(h, g_row, b_row):
        # Training-mode BatchNorm1d (biased variance, eps=1e-5), shifted one-pass
        # statistics: both XLU reductions are independent and back-to-back;
        # zero-padded batch rows are excluded from the stats.
        c = h[0:1, :]                                # row 0 is always a real row
        hc = jnp.where(row_mask, h - c, 0.0)
        s1 = jnp.sum(hc, axis=0, keepdims=True) * inv_n        # E[h] - c
        s2 = jnp.sum(hc * hc, axis=0, keepdims=True) * inv_n   # E[(h-c)^2]
        var = s2 - s1 * s1
        mean = c + s1
        scale = jax.lax.rsqrt(var + BN_EPS) * vec(g_row)
        shift = vec(b_row) - mean * scale
        return jnp.maximum(h * scale + shift, 0.0)

    x = x_ref[...]

    # ---- encoder: Linear + BN + ReLU, Linear + ReLU
    h1 = bn_relu(linear(x, w_ref[0]) + vec(0), 1, 2)
    enc = jnp.maximum(linear(h1, w_ref[1]) + vec(3), 0.0)

    # ---- decoder first layer and feature layer both consume `enc`:
    #      one fused 2P-wide matmul, split with static lane-aligned slices.
    h35 = linear(enc, w35_ref[...])                  # (n_pad, 2P)
    hd = bn_relu(h35[:, :p] + vec(4), 5, 6)
    dec_ref[...] = jnp.maximum(linear(hd, w_ref[2]) + vec(7), 0.0)

    fea = jnp.maximum(h35[:, p:] + vec(8), 0.0)
    fc = linear(fea, w_ref[3]) + vec(9)              # (n_pad, P)

    # ---- per-bag max-pool + sigmoid: one additive mask (precomputed), one
    #      sublane max-reduce, one lane-dense full-tile store.
    masked = fc[None, :, :] + m_ref[...]             # (nb_pad, n_pad, P)
    y_ref[...] = jax.nn.sigmoid(jnp.max(masked, axis=1))


def init_params(key, neure_num):
    # PyTorch-convention params: W (out, in) ~ N(0, 0.1), b = 0 (_initialize_weights);
    # BatchNorm1d gamma=1, beta=0.
    d0, d1, d2, d3, d4 = neure_num
    ks = jax.random.split(key, 6)

    def lin(k, out_d, in_d):
        w = jax.random.normal(k, (out_d, in_d), jnp.float32) * 0.1
        b = jnp.zeros((out_d,), jnp.float32)
        return w, b

    w1, b1 = lin(ks[0], d1, d0)   # encoder Linear(d0, d1)
    w2, b2 = lin(ks[1], d2, d1)   # encoder Linear(d1, d2)
    w3, b3 = lin(ks[2], d1, d2)   # decoder Linear(d2, d1)
    w4, b4 = lin(ks[3], d0, d1)   # decoder Linear(d1, d0)
    w5, b5 = lin(ks[4], d3, d2)   # feature Linear(d2, d3)
    w6, b6 = lin(ks[5], d4, d3)   # fc Linear(d3, d4)
    g1 = jnp.ones((d1,), jnp.float32); be1 = jnp.zeros((d1,), jnp.float32)
    g3 = jnp.ones((d1,), jnp.float32); be3 = jnp.zeros((d1,), jnp.float32)
    return (w1, b1, g1, be1, w2, b2,
            w3, b3, g3, be3, w4, b4,
            w5, b5, w6, b6)


def pack_params(params, neure_num):
    """Done once, outside the kernel:
       * transpose Linear weights to (in, out), zero-pad every feature dim to the
         common lane multiple P, cast to bf16,
       * stack the four weights into one (4, P, P) array,
       * fuse the two `enc`-consuming weights (decoder w3 | feature w5) into one
         (P, 2P) array,
       * stack the ten bias/gamma/beta vectors into one (16, P) f32 array."""
    (w1, b1, g1, be1, w2, b2, w3, b3, g3, be3, w4, b4, w5, b5, w6, b6) = params
    P = max(_round_up(d, LANE) for d in neure_num)

    def pw(w):                      # (out, in) -> transposed, padded (P, P) bf16
        wt = w.T
        return jnp.pad(wt, ((0, P - wt.shape[0]),
                            (0, P - wt.shape[1]))).astype(jnp.bfloat16)

    def pv(v):                      # (out,) -> padded (P,) f32
        return jnp.pad(v, (0, P - v.shape[0]))

    w_stack = jnp.stack([pw(w1), pw(w2), pw(w4), pw(w6)], axis=0)   # (4, P, P)
    w35 = jnp.concatenate([pw(w3), pw(w5)], axis=1)                  # (P, 2P)
    vecs = [b1, g1, be1, b2, b3, g3, be3, b4, b5, b6]
    v_stack = jnp.stack([pv(v) for v in vecs]
                        + [jnp.zeros((P,), jnp.float32)] * (16 - len(vecs)),
                        axis=0)                                      # (16, P)
    return w_stack, w35, v_stack


def _bag_neg_mask(bag, n_pad, nb_pad):
    # Static bag membership -> additive mask: 0 where row belongs to bag,
    # -1e30 otherwise (padded rows / padded bags stay finite -> sigmoid -> 0).
    seg = np.full((n_pad,), -1, np.int64)
    s = 0
    for i, bsz in enumerate(bag):
        seg[s:s + bsz] = i
        s += bsz
    keep = np.arange(nb_pad)[:, None] == seg[None, :]
    return jnp.asarray(np.where(keep, 0.0, NEG_BIG).astype(np.float32)[:, :, None])


@functools.partial(jax.jit, static_argnames=("bag", "neure_num"))
def textnet_forward(x, packed_params, bag, neure_num):
    d0, d1, d2, d3, d4 = neure_num
    P = max(_round_up(d, LANE) for d in neure_num)
    n = x.shape[0]
    n_pad = _round_up(n, SUBLANE)
    nb = len(bag)
    nb_pad = _round_up(nb, SUBLANE)
    assert sum(bag) == n and all(b >= 1 for b in bag), \
        "bag sizes must be >=1 and sum to N"

    w_stack, w35, v_stack = packed_params
    x_pad = jnp.pad(x, ((0, n_pad - n), (0, P - d0)))
    neg_mask = _bag_neg_mask(bag, n_pad, nb_pad)

    # Advisory cost estimate + explicit scoped-VMEM sizing (all static ints).
    in_bytes = (x_pad.size * 4 + w_stack.size * 2 + w35.size * 2
                + v_stack.size * 4 + neg_mask.size * 4)
    out_bytes = (nb_pad * P + n_pad * P) * 4
    act_bytes = (10 * n_pad * P + nb_pad * n_pad * P) * 4
    flops = 2 * n_pad * (4 * P * P + P * 2 * P)
    transcendentals = nb_pad * P + 4 * P
    vmem_limit = int(min(64 << 20,
                         max(16 << 20, 8 * (in_bytes + out_bytes + act_bytes))))

    kernel = functools.partial(textnet_kernel, n_real=n, p=P)
    vmem = pl.BlockSpec(memory_space=pltpu.MemorySpace.VMEM)
    y_pad, dec_pad = pl.pallas_call(
        kernel,
        out_shape=(jax.ShapeDtypeStruct((nb_pad, P), jnp.float32),
                   jax.ShapeDtypeStruct((n_pad, P), jnp.float32)),
        in_specs=[vmem] * 5,
        out_specs=(vmem, vmem),
        compiler_params=pltpu.CompilerParams(vmem_limit_bytes=vmem_limit),
        cost_estimate=pl.CostEstimate(flops=flops,
                                      transcendentals=transcendentals,
                                      bytes_accessed=in_bytes + out_bytes),
    )(x_pad, w_stack, w35, v_stack, neg_mask)

    # Slice logical dims back out (outside the kernel — stores stay lane-dense).
    return y_pad[:nb, :d4], x, dec_pad[:n, :d0]


def ref_forward(x, params, bag):
    (w1, b1, g1, be1, w2, b2, w3, b3, g3, be3, w4, b4, w5, b5, w6, b6) = params

    def lin(h, w, b):
        return h @ w.T + b

    def bn(h, g, b):
        m = h.mean(0, keepdims=True)
        v = ((h - m) ** 2).mean(0, keepdims=True)
        return (h - m) / jnp.sqrt(v + BN_EPS) * g + b

    h = jax.nn.relu(bn(lin(x, w1, b1), g1, be1))
    enc = jax.nn.relu(lin(h, w2, b2))
    hd = jax.nn.relu(bn(lin(enc, w3, b3), g3, be3))
    dec = jax.nn.relu(lin(hd, w4, b4))
    fea = jax.nn.relu(lin(enc, w5, b5))
    fc = lin(fea, w6, b6)
    rows, s = [], 0
    for bsz in bag:
        rows.append(fc[s:s + bsz].max(0, keepdims=True))
        s += bsz
    return jax.nn.sigmoid(jnp.concatenate(rows, 0)), x, dec


if __name__ == "__main__":
    neure_num = (32, 64, 16, 32, 8)   # (d0, d1, d2, d3, d4)
    bag = (3, 5)                      # static bag sizes, sum == N
    n = sum(bag)

    key = jax.random.PRNGKey(0)
    kx, kp = jax.random.split(key)
    x = jax.random.normal(kx, (n, neure_num[0]), jnp.float32)
    params = init_params(kp, neure_num)
    packed = pack_params(params, neure_num)

    y, x_out, dec = textnet_forward(x, packed, bag, neure_num)
    jax.block_until_ready((y, x_out, dec))

    y_ref, _, dec_ref = ref_forward(x, params, bag)
    # bf16 matmul operands (f32 accumulation) -> looser tolerances than pure f32.
    assert jnp.allclose(y, y_ref, atol=1e-2, rtol=1e-2), \
        f"y max abs err = {float(jnp.max(jnp.abs(y - y_ref)))}"
    assert jnp.allclose(dec, dec_ref, atol=5e-2, rtol=5e-2), \
        f"dec max abs err = {float(jnp.max(jnp.abs(dec - dec_ref)))}"
    assert jnp.array_equal(x_out, x)

    print("KERNEL_OK")
</pallas_src>

<mosaic_0001>
module attributes {stable_mosaic.version = 11 : i64} {
  func.func @textnet_kernel(%arg0: memref<8x128xf32, #tpu.memory_space<vmem>>, %arg1: memref<4x128x128xbf16, #tpu.memory_space<vmem>>, %arg2: memref<128x256xbf16, #tpu.memory_space<vmem>>, %arg3: memref<16x128xf32, #tpu.memory_space<vmem>>, %arg4: memref<8x8x1xf32, #tpu.memory_space<vmem>>, %arg5: memref<8x128xf32, #tpu.memory_space<vmem>>, %arg6: memref<8x128xf32, #tpu.memory_space<vmem>>) attributes {dimension_semantics = [], scalar_prefetch = 0 : i64, scratch_operands = 0 : i64, tpu.core_type = #tpu.core_type<tc>} {
    %0 = tpu.iota {dimensions = array<i32: 0>} : vector<8x1xi32>
    %c8_i32 = arith.constant 8 : i32
    %1 = vector.broadcast %c8_i32 : i32 to vector<8x1xi32>
    %2 = arith.cmpi slt, %0, %1 : vector<8x1xi32>
    %c0 = arith.constant 0 : index
    %c0_0 = arith.constant 0 : index
    %3 = vector.load %arg3[%c0, %c0_0] : memref<16x128xf32, #tpu.memory_space<vmem>>, vector<16x128xf32>
    %c0_1 = arith.constant 0 : index
    %c0_2 = arith.constant 0 : index
    %4 = vector.load %arg0[%c0_1, %c0_2] : memref<8x128xf32, #tpu.memory_space<vmem>>, vector<8x128xf32>
    %c0_3 = arith.constant 0 : index
    %c0_4 = arith.constant 0 : index
    %c0_5 = arith.constant 0 : index
    %5 = vector.load %arg1[%c0_3, %c0_4, %c0_5] : memref<4x128x128xbf16, #tpu.memory_space<vmem>>, vector<1x128x128xbf16>
    %6 = vector.shape_cast %5 : vector<1x128x128xbf16> to vector<128x128xbf16>
    %7 = arith.truncf %4 : vector<8x128xf32> to vector<8x128xbf16>
    %cst = arith.constant dense<0.000000e+00> : vector<8x128xf32>
    %8 = tpu.matmul %7, %6, %cst {dimension_numbers = #tpu.dot_dimension_numbers<[1], [0], [0], [1], [0, 0, 1, 1], [], []>} : vector<8x128xbf16>, vector<128x128xbf16>, vector<8x128xf32> -> vector<8x128xf32>
    %9 = vector.extract_strided_slice %3 {offsets = [0, 0], sizes = [1, 128], strides = [1, 1]} : vector<16x128xf32> to vector<1x128xf32>
    %10 = vector.broadcast %9 : vector<1x128xf32> to vector<8x128xf32>
    %11 = arith.addf %8, %10 : vector<8x128xf32>
    %12 = vector.extract_strided_slice %11 {offsets = [0, 0], sizes = [1, 128], strides = [1, 1]} : vector<8x128xf32> to vector<1x128xf32>
    %13 = vector.broadcast %12 : vector<1x128xf32> to vector<8x128xf32>
    %14 = arith.subf %11, %13 : vector<8x128xf32>
    %cst_6 = arith.constant 0.000000e+00 : f32
    %15 = vector.shape_cast %2 : vector<8x1xi1> to vector<8x1xi1>
    %16 = vector.broadcast %15 : vector<8x1xi1> to vector<8x128xi1>
    %17 = vector.broadcast %cst_6 : f32 to vector<8x128xf32>
    %18 = arith.select %16, %14, %17 : vector<8x128xi1>, vector<8x128xf32>
    %cst_7 = arith.constant dense<0.000000e+00> : vector<128xf32>
    %19 = vector.multi_reduction <add>, %18, %cst_7 [0] : vector<8x128xf32> to vector<128xf32>
    %20 = vector.shape_cast %19 : vector<128xf32> to vector<1x128xf32>
    %cst_8 = arith.constant 1.250000e-01 : f32
    %21 = vector.broadcast %cst_8 : f32 to vector<1x128xf32>
    %22 = arith.mulf %20, %21 : vector<1x128xf32>
    %23 = arith.mulf %18, %18 : vector<8x128xf32>
    %cst_9 = arith.constant dense<0.000000e+00> : vector<128xf32>
    %24 = vector.multi_reduction <add>, %23, %cst_9 [0] : vector<8x128xf32> to vector<128xf32>
    %25 = vector.shape_cast %24 : vector<128xf32> to vector<1x128xf32>
    %cst_10 = arith.constant 1.250000e-01 : f32
    %26 = vector.broadcast %cst_10 : f32 to vector<1x128xf32>
    %27 = arith.mulf %25, %26 : vector<1x128xf32>
    %28 = arith.mulf %22, %22 : vector<1x128xf32>
    %29 = arith.subf %27, %28 : vector<1x128xf32>
    %30 = arith.addf %12, %22 : vector<1x128xf32>
    %cst_11 = arith.constant 9.99999974E-6 : f32
    %31 = vector.broadcast %cst_11 : f32 to vector<1x128xf32>
    %32 = arith.addf %29, %31 : vector<1x128xf32>
    %33 = math.rsqrt %32 : vector<1x128xf32>
    %34 = vector.extract_strided_slice %3 {offsets = [1, 0], sizes = [1, 128], strides = [1, 1]} : vector<16x128xf32> to vector<1x128xf32>
    %35 = arith.mulf %33, %34 : vector<1x128xf32>
    %36 = vector.extract_strided_slice %3 {offsets = [2, 0], sizes = [1, 128], strides = [1, 1]} : vector<16x128xf32> to vector<1x128xf32>
    %37 = arith.mulf %30, %35 : vector<1x128xf32>
    %38 = arith.subf %36, %37 : vector<1x128xf32>
    %39 = vector.broadcast %35 : vector<1x128xf32> to vector<8x128xf32>
    %40 = arith.mulf %11, %39 : vector<8x128xf32>
    %41 = vector.broadcast %38 : vector<1x128xf32> to vector<8x128xf32>
    %42 = arith.addf %40, %41 : vector<8x128xf32>
    %cst_12 = arith.constant 0.000000e+00 : f32
    %43 = vector.broadcast %cst_12 : f32 to vector<8x128xf32>
    %44 = arith.maximumf %42, %43 : vector<8x128xf32>
    %c1 = arith.constant 1 : index
    %c0_13 = arith.constant 0 : index
    %c0_14 = arith.constant 0 : index
    %45 = vector.load %arg1[%c1, %c0_13, %c0_14] : memref<4x128x128xbf16, #tpu.memory_space<vmem>>, vector<1x128x128xbf16>
    %46 = vector.shape_cast %45 : vector<1x128x128xbf16> to vector<128x128xbf16>
    %47 = arith.truncf %44 : vector<8x128xf32> to vector<8x128xbf16>
    %cst_15 = arith.constant dense<0.000000e+00> : vector<8x128xf32>
    %48 = tpu.matmul %47, %46, %cst_15 {dimension_numbers = #tpu.dot_dimension_numbers<[1], [0], [0], [1], [0, 0, 1, 1], [], []>} : vector<8x128xbf16>, vector<128x128xbf16>, vector<8x128xf32> -> vector<8x128xf32>
    %49 = vector.extract_strided_slice %3 {offsets = [3, 0], sizes = [1, 128], strides = [1, 1]} : vector<16x128xf32> to vector<1x128xf32>
    %50 = vector.broadcast %49 : vector<1x128xf32> to vector<8x128xf32>
    %51 = arith.addf %48, %50 : vector<8x128xf32>
    %cst_16 = arith.constant 0.000000e+00 : f32
    %52 = vector.broadcast %cst_16 : f32 to vector<8x128xf32>
    %53 = arith.maximumf %51, %52 : vector<8x128xf32>
    %c0_17 = arith.constant 0 : index
    %c0_18 = arith.constant 0 : index
    %54 = vector.load %arg2[%c0_17, %c0_18] : memref<128x256xbf16, #tpu.memory_space<vmem>>, vector<128x256xbf16>
    %55 = arith.truncf %53 : vector<8x128xf32> to vector<8x128xbf16>
    %cst_19 = arith.constant dense<0.000000e+00> : vector<8x256xf32>
    %56 = tpu.matmul %55, %54, %cst_19 {dimension_numbers = #tpu.dot_dimension_numbers<[1], [0], [0], [1], [0, 0, 1, 1], [], []>} : vector<8x128xbf16>, vector<128x256xbf16>, vector<8x256xf32> -> vector<8x256xf32>
    %57 = vector.extract_strided_slice %56 {offsets = [0, 0], sizes = [8, 128], strides = [1, 1]} : vector<8x256xf32> to vector<8x128xf32>
    %58 = vector.extract_strided_slice %3 {offsets = [4, 0], sizes = [1, 128], strides = [1, 1]} : vector<16x128xf32> to vector<1x128xf32>
    %59 = vector.broadcast %58 : vector<1x128xf32> to vector<8x128xf32>
    %60 = arith.addf %57, %59 : vector<8x128xf32>
    %61 = vector.extract_strided_slice %60 {offsets = [0, 0], sizes = [1, 128], strides = [1, 1]} : vector<8x128xf32> to vector<1x128xf32>
    %62 = vector.broadcast %61 : vector<1x128xf32> to vector<8x128xf32>
    %63 = arith.subf %60, %62 : vector<8x128xf32>
    %cst_20 = arith.constant 0.000000e+00 : f32
    %64 = vector.shape_cast %2 : vector<8x1xi1> to vector<8x1xi1>
    %65 = vector.broadcast %64 : vector<8x1xi1> to vector<8x128xi1>
    %66 = vector.broadcast %cst_20 : f32 to vector<8x128xf32>
    %67 = arith.select %65, %63, %66 : vector<8x128xi1>, vector<8x128xf32>
    %cst_21 = arith.constant dense<0.000000e+00> : vector<128xf32>
    %68 = vector.multi_reduction <add>, %67, %cst_21 [0] : vector<8x128xf32> to vector<128xf32>
    %69 = vector.shape_cast %68 : vector<128xf32> to vector<1x128xf32>
    %cst_22 = arith.constant 1.250000e-01 : f32
    %70 = vector.broadcast %cst_22 : f32 to vector<1x128xf32>
    %71 = arith.mulf %69, %70 : vector<1x128xf32>
    %72 = arith.mulf %67, %67 : vector<8x128xf32>
    %cst_23 = arith.constant dense<0.000000e+00> : vector<128xf32>
    %73 = vector.multi_reduction <add>, %72, %cst_23 [0] : vector<8x128xf32> to vector<128xf32>
    %74 = vector.shape_cast %73 : vector<128xf32> to vector<1x128xf32>
    %cst_24 = arith.constant 1.250000e-01 : f32
    %75 = vector.broadcast %cst_24 : f32 to vector<1x128xf32>
    %76 = arith.mulf %74, %75 : vector<1x128xf32>
    %77 = arith.mulf %71, %71 : vector<1x128xf32>
    %78 = arith.subf %76, %77 : vector<1x128xf32>
    %79 = arith.addf %61, %71 : vector<1x128xf32>
    %cst_25 = arith.constant 9.99999974E-6 : f32
    %80 = vector.broadcast %cst_25 : f32 to vector<1x128xf32>
    %81 = arith.addf %78, %80 : vector<1x128xf32>
    %82 = math.rsqrt %81 : vector<1x128xf32>
    %83 = vector.extract_strided_slice %3 {offsets = [5, 0], sizes = [1, 128], strides = [1, 1]} : vector<16x128xf32> to vector<1x128xf32>
    %84 = arith.mulf %82, %83 : vector<1x128xf32>
    %85 = vector.extract_strided_slice %3 {offsets = [6, 0], sizes = [1, 128], strides = [1, 1]} : vector<16x128xf32> to vector<1x128xf32>
    %86 = arith.mulf %79, %84 : vector<1x128xf32>
    %87 = arith.subf %85, %86 : vector<1x128xf32>
    %88 = vector.broadcast %84 : vector<1x128xf32> to vector<8x128xf32>
    %89 = arith.mulf %60, %88 : vector<8x128xf32>
    %90 = vector.broadcast %87 : vector<1x128xf32> to vector<8x128xf32>
    %91 = arith.addf %89, %90 : vector<8x128xf32>
    %cst_26 = arith.constant 0.000000e+00 : f32
    %92 = vector.broadcast %cst_26 : f32 to vector<8x128xf32>
    %93 = arith.maximumf %91, %92 : vector<8x128xf32>
    %c2 = arith.constant 2 : index
    %c0_27 = arith.constant 0 : index
    %c0_28 = arith.constant 0 : index
    %94 = vector.load %arg1[%c2, %c0_27, %c0_28] : memref<4x128x128xbf16, #tpu.memory_space<vmem>>, vector<1x128x128xbf16>
    %95 = vector.shape_cast %94 : vector<1x128x128xbf16> to vector<128x128xbf16>
    %96 = arith.truncf %93 : vector<8x128xf32> to vector<8x128xbf16>
    %cst_29 = arith.constant dense<0.000000e+00> : vector<8x128xf32>
    %97 = tpu.matmul %96, %95, %cst_29 {dimension_numbers = #tpu.dot_dimension_numbers<[1], [0], [0], [1], [0, 0, 1, 1], [], []>} : vector<8x128xbf16>, vector<128x128xbf16>, vector<8x128xf32> -> vector<8x128xf32>
    %98 = vector.extract_strided_slice %3 {offsets = [7, 0], sizes = [1, 128], strides = [1, 1]} : vector<16x128xf32> to vector<1x128xf32>
    %99 = vector.broadcast %98 : vector<1x128xf32> to vector<8x128xf32>
    %100 = arith.addf %97, %99 : vector<8x128xf32>
    %cst_30 = arith.constant 0.000000e+00 : f32
    %101 = vector.broadcast %cst_30 : f32 to vector<8x128xf32>
    %102 = arith.maximumf %100, %101 : vector<8x128xf32>
    %c0_31 = arith.constant 0 : index
    %c0_32 = arith.constant 0 : index
    %103 = vector.load %arg6[%c0_31, %c0_32] : memref<8x128xf32, #tpu.memory_space<vmem>>, vector<8x128xf32>
    tpu.vector_store %arg6[%c0_31, %c0_32], %102 {strides = array<i32>} : memref<8x128xf32, #tpu.memory_space<vmem>>, vector<8x128xf32>,
    %104 = vector.extract_strided_slice %56 {offsets = [0, 128], sizes = [8, 128], strides = [1, 1]} : vector<8x256xf32> to vector<8x128xf32>
    %105 = vector.extract_strided_slice %3 {offsets = [8, 0], sizes = [1, 128], strides = [1, 1]} : vector<16x128xf32> to vector<1x128xf32>
    %106 = vector.broadcast %105 : vector<1x128xf32> to vector<8x128xf32>
    %107 = arith.addf %104, %106 : vector<8x128xf32>
    %cst_33 = arith.constant 0.000000e+00 : f32
    %108 = vector.broadcast %cst_33 : f32 to vector<8x128xf32>
    %109 = arith.maximumf %107, %108 : vector<8x128xf32>
    %c3 = arith.constant 3 : index
    %c0_34 = arith.constant 0 : index
    %c0_35 = arith.constant 0 : index
    %110 = vector.load %arg1[%c3, %c0_34, %c0_35] : memref<4x128x128xbf16, #tpu.memory_space<vmem>>, vector<1x128x128xbf16>
    %111 = vector.shape_cast %110 : vector<1x128x128xbf16> to vector<128x128xbf16>
    %112 = arith.truncf %109 : vector<8x128xf32> to vector<8x128xbf16>
    %cst_36 = arith.constant dense<0.000000e+00> : vector<8x128xf32>
    %113 = tpu.matmul %112, %111, %cst_36 {dimension_numbers = #tpu.dot_dimension_numbers<[1], [0], [0], [1], [0, 0, 1, 1], [], []>} : vector<8x128xbf16>, vector<128x128xbf16>, vector<8x128xf32> -> vector<8x128xf32>
    %114 = vector.extract_strided_slice %3 {offsets = [9, 0], sizes = [1, 128], strides = [1, 1]} : vector<16x128xf32> to vector<1x128xf32>
    %115 = vector.broadcast %114 : vector<1x128xf32> to vector<8x128xf32>
    %116 = arith.addf %113, %115 : vector<8x128xf32>
    %117 = vector.shape_cast %116 : vector<8x128xf32> to vector<1x8x128xf32>
    %c0_37 = arith.constant 0 : index
    %c0_38 = arith.constant 0 : index
    %c0_39 = arith.constant 0 : index
    %118 = vector.load %arg4[%c0_37, %c0_38, %c0_39] : memref<8x8x1xf32, #tpu.memory_space<vmem>>, vector<8x8x1xf32>
    %119 = vector.broadcast %117 : vector<1x8x128xf32> to vector<8x8x128xf32>
    %120 = vector.broadcast %118 : vector<8x8x1xf32> to vector<8x8x128xf32>
    %121 = arith.addf %119, %120 : vector<8x8x128xf32>
    %cst_40 = arith.constant dense<0xFF800000> : vector<8x128xf32>
    %122 = vector.multi_reduction <maximumf>, %121, %cst_40 [1] : vector<8x8x128xf32> to vector<8x128xf32>
    %123 = arith.negf %122 : vector<8x128xf32>
    %124 = math.exp %123 : vector<8x128xf32>
    %cst_41 = arith.constant 1.000000e+00 : f32
    %125 = vector.broadcast %cst_41 : f32 to vector<8x128xf32>
    %126 = arith.addf %125, %124 : vector<8x128xf32>
    %127 = arith.divf %125, %126 : vector<8x128xf32>
    %c0_42 = arith.constant 0 : index
    %c0_43 = arith.constant 0 : index
    %128 = vector.load %arg5[%c0_42, %c0_43] : memref<8x128xf32, #tpu.memory_space<vmem>>, vector<8x128xf32>
    tpu.vector_store %arg5[%c0_42, %c0_43], %127 {strides = array<i32>} : memref<8x128xf32, #tpu.memory_space<vmem>>, vector<8x128xf32>,
    return
  }
}

</mosaic_0001>

<llo_original>
// kernel: textnet_forward.1
$region0: #{textnet_forward.1}
  #allocation0 [shape = 'u32[]', space=smem, size = 0x4, offset = 0x4, fixed_abs, tag = 'smem constant byte address 0x4 - core index']
  #allocation1 [shape = 'u32[144,128]{1,0:T(1,128)}', space=vmem, size = 0x12000, scoped, tag = 'internal scratch']
  %s0 = inlined_call_operand.vmem [shape: f32[8,128], index: 0, kind: input, shape index: {}]
  %s1 = inlined_call_operand.hbm [shape: bf16[4,128,128], index: 1, kind: input, shape index: {}]
  %s2 = inlined_call_operand.hbm [shape: bf16[128,256], index: 2, kind: input, shape index: {}]
  %s3 = inlined_call_operand.vmem [shape: f32[16,128], index: 3, kind: input, shape index: {}]
  %s4 = inlined_call_operand.hbm [shape: f32[8,8,1], index: 4, kind: input, shape index: {}]
  %s5 = inlined_call_operand.vmem [shape: f32[8,128], index: 5, kind: output, shape index: {0}]
  %s6 = inlined_call_operand.hbm [shape: f32[8,128], index: 6, kind: output, shape index: {1}]
  %7 = xla_tuple %s5, %s6
  %s8 = sld [smem:[#allocation0]]
  $region50: #{textnet_forward.1} parent=0
    _
  %s10 = ssub.s32 1, %s8
  %s11 = scalar_select 0, %s10, %s8
  $region1: #{textnet_forward.1} parent=0
    #allocation2 [shape = 'u8[131072]{0}', space=vmem, size = 0x20000, scoped, tag = 'input window, operand 1, single buffered']
    #allocation3 [shape = 's32[1]{0}', space=sflag, size = 0x4, scoped, tag = 'scoped memory for textnet_forward.1']
    #allocation4 [shape = 's32[1]{0}', space=sflag, size = 0x4, scoped, tag = 'scoped memory for textnet_forward.1']
    #allocation5 [shape = 'u8[65536]{0}', space=vmem, size = 0x10000, scoped, tag = 'input window, operand 2, single buffered']
    #allocation6 [shape = 's32[1]{0}', space=sflag, size = 0x4, scoped, tag = 'scoped memory for textnet_forward.1']
    #allocation7 [shape = 'u8[32768]{0}', space=vmem, size = 0x8000, scoped, tag = 'input window, operand 4, single buffered']
    #allocation8 [shape = 'u8[4096]{0}', space=vmem, size = 0x1000, scoped, tag = 'output window, operand 1, single buffered']
    %12 = vsyncpa [#allocation3], 0
    %13 = vsyncpa [#allocation6], 0
    %14 = vsyncpa [#allocation4], 0
    // Predicated region
    $region2: #{textnet_forward.1} parent=1 // pred_check
      _
    $region3: #{textnet_forward.1} parent=1 // pred_check_branch
      %16 = sbr.rel (0) target = $region5
    $region4: #{textnet_forward.1} parent=1 // pred_region
      _
    $region5: #{textnet_forward.1} parent=1 // pred_fallthru
      _
    // Predicated region
    $region6: #{textnet_forward.1} parent=1 // pred_check
      _
    $region7: #{textnet_forward.1} parent=1 // pred_check_branch
      %18 = sbr.rel (0) target = $region9
    $region8: #{textnet_forward.1} parent=1 // pred_region
      %s20 = ssub.s32 4096, 4096
      %21 = vsyncadd [#allocation3], %s20
      %s22 = sshll.u32 [#allocation2], 4
      %s23 = int_to_ptr.vmem [resolvable:$true] %s22
      %28 = dma.hbm_to_vmem [thread:$0]  %s1, 4096, %s23, [#allocation3], 64, 64, 4
    $region9: #{textnet_forward.1} parent=1 // pred_fallthru
      _
    // Predicated region
    $region10: #{textnet_forward.1} parent=1 // pred_check
      _
    $region11: #{textnet_forward.1} parent=1 // pred_check_branch
      %30 = sbr.rel (0) target = $region13
    $region12: #{textnet_forward.1} parent=1 // pred_region
      %s32 = ssub.s32 2048, 2048
      %33 = vsyncadd [#allocation6], %s32
      %s34 = sshll.u32 [#allocation5], 4
      %s35 = int_to_ptr.vmem [resolvable:$true] %s34
      %40 = dma.hbm_to_vmem [thread:$0]  %s2, 2048, %s35, [#allocation6], 128, 128, 8
    $region13: #{textnet_forward.1} parent=1 // pred_fallthru
      _
    // Predicated region
    $region14: #{textnet_forward.1} parent=1 // pred_check
      _
    $region15: #{textnet_forward.1} parent=1 // pred_check_branch
      %42 = sbr.rel (0) target = $region17
    $region16: #{textnet_forward.1} parent=1 // pred_region
      _
    $region17: #{textnet_forward.1} parent=1 // pred_fallthru
      _
    // Predicated region
    $region18: #{textnet_forward.1} parent=1 // pred_check
      _
    $region19: #{textnet_forward.1} parent=1 // pred_check_branch
      %44 = sbr.rel (0) target = $region21
    $region20: #{textnet_forward.1} parent=1 // pred_region
      %s46 = ssub.s32 1024, 1024
      %47 = vsyncadd [#allocation6], %s46
      %s48 = sshll.u32 [#allocation7], 4
      %s49 = int_to_ptr.vmem [resolvable:$true] %s48
      %54 = dma.hbm_to_vmem [thread:$0]  %s4, 1024, %s49, [#allocation6], 128, 128, 8
    $region21: #{textnet_forward.1} parent=1 // pred_fallthru
      _
    // Predicated region
    $region22: #{textnet_forward.1} parent=1 // pred_check
      _
    $region23: #{textnet_forward.1} parent=1 // pred_check_branch
      %56 = sbr.rel (0) target = $region25
    $region24: #{textnet_forward.1} parent=1 // pred_region
      %57 = dma.done [#allocation3], 4096
    $region25: #{textnet_forward.1} parent=1 // pred_fallthru
      _
    // Predicated region
    $region26: #{textnet_forward.1} parent=1 // pred_check
      _
    $region27: #{textnet_forward.1} parent=1 // pred_check_branch
      %59 = sbr.rel (0) target = $region29
    $region28: #{textnet_forward.1} parent=1 // pred_region
      %60 = dma.done [#allocation6], 2048
    $region29: #{textnet_forward.1} parent=1 // pred_fallthru
      _
    // Predicated region
    $region30: #{textnet_forward.1} parent=1 // pred_check
      _
    $region31: #{textnet_forward.1} parent=1 // pred_check_branch
      %62 = sbr.rel (0) target = $region33
    $region32: #{textnet_forward.1} parent=1 // pred_region
      %63 = dma.done [#allocation6], 1024
    $region33: #{textnet_forward.1} parent=1 // pred_fallthru
      _
    %v65 = vlaneseq
    %v66 = vshrl.u32 %v65, 7
    %vm67 = vcmp.lt.s32.totalorder %v66, 8
    %v68 = vld [vmem:[%s3] sm:$0xff]
    %v69 = vld [vmem:[%s3 + $0x8] sm:$0xff]
    %v70 = vld [vmem:[%s0] sm:$0xff]
    %v71 = vld [vmem:[#allocation2] sm:$0xf]
    %v72 = vld [vmem:[#allocation2 + $0x4] sm:$0xf]
    %v73 = vld [vmem:[#allocation2 + $0x8] sm:$0xf]
    %v74 = vld [vmem:[#allocation2 + $0xc] sm:$0xf]
    %v75 = vld [vmem:[#allocation2 + $0x10] sm:$0xf]
    %v76 = vld [vmem:[#allocation2 + $0x14] sm:$0xf]
    %v77 = vld [vmem:[#allocation2 + $0x18] sm:$0xf]
    %v78 = vld [vmem:[#allocation2 + $0x1c] sm:$0xf]
    %v79 = vld [vmem:[#allocation2 + $0x20] sm:$0xf]
    %v80 = vld [vmem:[#allocation2 + $0x24] sm:$0xf]
    %v81 = vld [vmem:[#allocation2 + $0x28] sm:$0xf]
    %v82 = vld [vmem:[#allocation2 + $0x2c] sm:$0xf]
    %v83 = vld [vmem:[#allocation2 + $0x30] sm:$0xf]
    %v84 = vld [vmem:[#allocation2 + $0x34] sm:$0xf]
    %v85 = vld [vmem:[#allocation2 + $0x38] sm:$0xf]
    %v86 = vld [vmem:[#allocation2 + $0x3c] sm:$0xf]
    %v87 = vpack.c.bf16 %v70, %v70
    %v88 = vlaneseq
    %v89 = vshrl.u32 %v88, 7
    %v90 = vsub.s32 0, %v89
    %v91 = vrot.slane %v68, %v90
    %v108 = vunpack.c.l.b16 %v71
    %v109 = vunpack.c.l.b16 %v72
    %v110 = vunpack.c.l.b16 %v73
    %v111 = vunpack.c.l.b16 %v74
    %v112 = vunpack.c.l.b16 %v75
    %v113 = vunpack.c.l.b16 %v76
    %v114 = vunpack.c.l.b16 %v77
    %v115 = vunpack.c.l.b16 %v78
    %v116 = vunpack.c.l.b16 %v79
    %v117 = vunpack.c.l.b16 %v80
    %v118 = vunpack.c.l.b16 %v81
    %v119 = vunpack.c.l.b16 %v82
    %v120 = vunpack.c.l.b16 %v83
    %v121 = vunpack.c.l.b16 %v84
    %v122 = vunpack.c.l.b16 %v85
    %v123 = vunpack.c.l.b16 %v86
    %v124 = vpack.c.b16 %v109, %v108
    %v125 = vpack.c.b16 %v111, %v110
    %v126 = vpack.c.b16 %v113, %v112
    %v127 = vpack.c.b16 %v115, %v114
    %v128 = vpack.c.b16 %v117, %v116
    %v129 = vpack.c.b16 %v119, %v118
    %v130 = vpack.c.b16 %v121, %v120
    %v131 = vpack.c.b16 %v123, %v122
    %140 = vmatprep.subr.bf16.mxu0 0
    %141 = vmatpush1.bf16.msra.mxu0 %v131
    %142 = vmatprep.subr.bf16.mxu0 0
    %143 = vmatpush1.bf16.msra.mxu0 %v130
    %144 = vmatprep.subr.bf16.mxu0 0
    %145 = vmatpush1.bf16.msra.mxu0 %v129
    %146 = vmatprep.subr.bf16.mxu0 0
    %147 = vmatpush1.bf16.msra.mxu0 %v128
    %148 = vmatprep.subr.bf16.mxu0 0
    %149 = vmatpush1.bf16.msra.mxu0 %v127
    %150 = vmatprep.subr.bf16.mxu0 0
    %151 = vmatpush1.bf16.msra.mxu0 %v126
    %152 = vmatprep.subr.bf16.mxu0 0
    %153 = vmatpush1.bf16.msra.mxu0 %v125
    %154 = vmatprep.subr.bf16.mxu0 0
    %155 = vmatpush1.bf16.msra.mxu0 %v124
    %156 = vmatprep.subr.bf16.mxu0 0
    %157 = vmatpush2.bf16.msra.mxu0 0
    %158 = vmatprep.subr.bf16.mxu0 0
    %159 = vmatpush2.bf16.msra.mxu0 0
    %160 = vmatprep.subr.bf16.mxu0 0
    %161 = vmatpush2.bf16.msra.mxu0 0
    %162 = vmatprep.subr.bf16.mxu0 0
    %163 = vmatpush2.bf16.msra.mxu0 0
    %164 = vmatprep.subr.bf16.mxu0 0
    %165 = vmatpush2.bf16.msra.mxu0 0
    %166 = vmatprep.subr.bf16.mxu0 0
    %167 = vmatpush2.bf16.msra.mxu0 0
    %168 = vmatprep.subr.bf16.mxu0 0
    %169 = vmatpush2.bf16.msra.mxu0 0
    %170 = vmatprep.subr.bf16.mxu0 0
    %171 = vmatpush2.bf16.msra.mxu0 0
    %172 = vmatprep.mubr.bf16.mxu0 0
    %173 = vmatmul.mubr.bf16.gmra.mxu0 %v87
    %v174 = vpop.f32.mrf.mxu0
    %v175 = vadd.f32 %v91, %v174
    %v176 = vpop.f32.mrf.mxu0
    %v177 = vpop.f32.mrf.mxu0
    %v178 = vpop.f32.mrf.mxu0
    %179 = vdwg.mxu0
    %v180 = vlaneseq
    %v181 = vshrl.u32 %v180, 7
    %v182 = vsub.s32 0, %v181
    %v183 = vrot.slane %v175, %v182
    %v184 = vsub.f32 %v175, %v183
    %v185 = vsel %vm67, 1, 0
    %vm186 = vcmp.eq.s32.totalorder %v185, 1
    %v187 = vsel %vm186, %v184, 0.0
    %v188 = vrot.slane %v187, 4
    %v189 = vadd.f32 %v187, %v188
    %v190 = vrot.slane %v189, 2
    %v191 = vadd.f32 %v189, %v190
    %v192 = vrot.slane %v191, 1
    %v193 = vadd.f32 %v191, %v192
    %v194 = vmul.f32 %v193, 0.125
    %v195 = vmul.f32 %v187, %v187
    %v196 = vrot.slane %v195, 4
    %v197 = vadd.f32 %v195, %v196
    %v198 = vrot.slane %v197, 2
    %v199 = vadd.f32 %v197, %v198
    %v200 = vrot.slane %v199, 1
    %v201 = vadd.f32 %v199, %v200
    %v202 = vmul.f32 %v201, 0.125
    %v203 = vmul.f32 %v194, %v194
    %v204 = vsub.f32 %v202, %v203
    %v205 = vadd.f32 %v175, %v194
    %v206 = vadd.f32 %v204, 1e-05
    %v207 = vrsqrt.pop %v206
    %v208 = vmul.f32 %v207, %v68
    %v210 = vrot.slane %v208, 1
    %v212 = vmul.f32 %v205, %v210
    %v214 = vrot.slane %v212, 6
    %v216 = vsub.f32 %v68, %v214
    %v217 = vlaneseq
    %v218 = vshrl.u32 %v217, 7
    %v219 = vsub.s32 1, %v218
    %v220 = vrot.slane %v208, %v219
    %v221 = vmul.f32 %v175, %v220
    %v222 = vlaneseq
    %v223 = vshrl.u32 %v222, 7
    %v224 = vsub.s32 2, %v223
    %v225 = vrot.slane %v216, %v224
    %v226 = vadd.f32 %v221, %v225
    %v227 = vmax.f32 %v226, 0.0
    %s228 = scalar_lea.vmem [#allocation2], 64
    %v229 = vld [vmem:[%s228] sm:$0xf]
    %v230 = vld [vmem:[%s228 + $0x4] sm:$0xf]
    %v231 = vld [vmem:[%s228 + $0x8] sm:$0xf]
    %v232 = vld [vmem:[%s228 + $0xc] sm:$0xf]
    %v233 = vld [vmem:[%s228 + $0x10] sm:$0xf]
    %v234 = vld [vmem:[%s228 + $0x14] sm:$0xf]
    %v235 = vld [vmem:[%s228 + $0x18] sm:$0xf]
    %v236 = vld [vmem:[%s228 + $0x1c] sm:$0xf]
    %v237 = vld [vmem:[%s228 + $0x20] sm:$0xf]
    %v238 = vld [vmem:[%s228 + $0x24] sm:$0xf]
    %v239 = vld [vmem:[%s228 + $0x28] sm:$0xf]
    %v240 = vld [vmem:[%s228 + $0x2c] sm:$0xf]
    %v241 = vld [vmem:[%s228 + $0x30] sm:$0xf]
    %v242 = vld [vmem:[%s228 + $0x34] sm:$0xf]
    %v243 = vld [vmem:[%s228 + $0x38] sm:$0xf]
    %v244 = vld [vmem:[%s228 + $0x3c] sm:$0xf]
    %v245 = vpack.c.bf16 %v227, %v227
    %v246 = vlaneseq
    %v247 = vshrl.u32 %v246, 7
    %v248 = vsub.s32 3, %v247
    %v249 = vrot.slane %v68, %v248
    %v266 = vunpack.c.l.b16 %v229
    %v267 = vunpack.c.l.b16 %v230
    %v268 = vunpack.c.l.b16 %v231
    %v269 = vunpack.c.l.b16 %v232
    %v270 = vunpack.c.l.b16 %v233
    %v271 = vunpack.c.l.b16 %v234
    %v272 = vunpack.c.l.b16 %v235
    %v273 = vunpack.c.l.b16 %v236
    %v274 = vunpack.c.l.b16 %v237
    %v275 = vunpack.c.l.b16 %v238
    %v276 = vunpack.c.l.b16 %v239
    %v277 = vunpack.c.l.b16 %v240
    %v278 = vunpack.c.l.b16 %v241
    %v279 = vunpack.c.l.b16 %v242
    %v280 = vunpack.c.l.b16 %v243
    %v281 = vunpack.c.l.b16 %v244
    %v282 = vpack.c.b16 %v267, %v266
    %v283 = vpack.c.b16 %v269, %v268
    %v284 = vpack.c.b16 %v271, %v270
    %v285 = vpack.c.b16 %v273, %v272
    %v286 = vpack.c.b16 %v275, %v274
    %v287 = vpack.c.b16 %v277, %v276
    %v288 = vpack.c.b16 %v279, %v278
    %v289 = vpack.c.b16 %v281, %v280
    %298 = vmatprep.subr.bf16.mxu0 0
    %299 = vmatpush1.bf16.msra.mxu0 %v289
    %300 = vmatprep.subr.bf16.mxu0 0
    %301 = vmatpush1.bf16.msra.mxu0 %v288
    %302 = vmatprep.subr.bf16.mxu0 0
    %303 = vmatpush1.bf16.msra.mxu0 %v287
    %304 = vmatprep.subr.bf16.mxu0 0
    %305 = vmatpush1.bf16.msra.mxu0 %v286
    %306 = vmatprep.subr.bf16.mxu0 0
    %307 = vmatpush1.bf16.msra.mxu0 %v285
    %308 = vmatprep.subr.bf16.mxu0 0
    %309 = vmatpush1.bf16.msra.mxu0 %v284
    %310 = vmatprep.subr.bf16.mxu0 0
    %311 = vmatpush1.bf16.msra.mxu0 %v283
    %312 = vmatprep.subr.bf16.mxu0 0
    %313 = vmatpush1.bf16.msra.mxu0 %v282
    %314 = vmatprep.subr.bf16.mxu0 0
    %315 = vmatpush2.bf16.msra.mxu0 0
    %316 = vmatprep.subr.bf16.mxu0 0
    %317 = vmatpush2.bf16.msra.mxu0 0
    %318 = vmatprep.subr.bf16.mxu0 0
    %319 = vmatpush2.bf16.msra.mxu0 0
    %320 = vmatprep.subr.bf16.mxu0 0
    %321 = vmatpush2.bf16.msra.mxu0 0
    %322 = vmatprep.subr.bf16.mxu0 0
    %323 = vmatpush2.bf16.msra.mxu0 0
    %324 = vmatprep.subr.bf16.mxu0 0
    %325 = vmatpush2.bf16.msra.mxu0 0
    %326 = vmatprep.subr.bf16.mxu0 0
    %327 = vmatpush2.bf16.msra.mxu0 0
    %328 = vmatprep.subr.bf16.mxu0 0
    %329 = vmatpush2.bf16.msra.mxu0 0
    %330 = vmatprep.mubr.bf16.mxu0 0
    %331 = vmatmul.mubr.bf16.gmra.mxu0 %v245
    %v332 = vpop.f32.mrf.mxu0
    %v333 = vadd.f32 %v249, %v332
    %v334 = vpop.f32.mrf.mxu0
    %v335 = vpop.f32.mrf.mxu0
    %v336 = vpop.f32.mrf.mxu0
    %337 = vdwg.mxu0
    %v338 = vmax.f32 %v333, 0.0
    %v339 = vld [vmem:[#allocation5] sm:$0xff]
    %v340 = vld [vmem:[#allocation5 + $0x8] sm:$0xff]
    %v341 = vld [vmem:[#allocation5 + $0x10] sm:$0xff]
    %v342 = vld [vmem:[#allocation5 + $0x18] sm:$0xff]
    %v343 = vld [vmem:[#allocation5 + $0x20] sm:$0xff]
    %v344 = vld [vmem:[#allocation5 + $0x28] sm:$0xff]
    %v345 = vld [vmem:[#allocation5 + $0x30] sm:$0xff]
    %v346 = vld [vmem:[#allocation5 + $0x38] sm:$0xff]
    %v347 = vld [vmem:[#allocation5 + $0x40] sm:$0xff]
    %v348 = vld [vmem:[#allocation5 + $0x48] sm:$0xff]
    %v349 = vld [vmem:[#allocation5 + $0x50] sm:$0xff]
    %v350 = vld [vmem:[#allocation5 + $0x58] sm:$0xff]
    %v351 = vld [vmem:[#allocation5 + $0x60] sm:$0xff]
    %v352 = vld [vmem:[#allocation5 + $0x68] sm:$0xff]
    %v353 = vld [vmem:[#allocation5 + $0x70] sm:$0xff]
    %v354 = vld [vmem:[#allocation5 + $0x78] sm:$0xff]
    %v355 = vpack.c.bf16 %v338, %v338
    %v372 = vunpack.c.l.b16 %v339
    %v373 = vunpack.c.h.b16 %v339
    %v374 = vunpack.c.l.b16 %v340
    %v375 = vunpack.c.h.b16 %v340
    %v376 = vunpack.c.l.b16 %v341
    %v377 = vunpack.c.h.b16 %v341
    %v378 = vunpack.c.l.b16 %v342
    %v379 = vunpack.c.h.b16 %v342
    %v380 = vunpack.c.l.b16 %v343
    %v381 = vunpack.c.h.b16 %v343
    %v382 = vunpack.c.l.b16 %v344
    %v383 = vunpack.c.h.b16 %v344
    %v384 = vunpack.c.l.b16 %v345
    %v385 = vunpack.c.h.b16 %v345
    %v386 = vunpack.c.l.b16 %v346
    %v387 = vunpack.c.h.b16 %v346
    %v388 = vunpack.c.l.b16 %v347
    %v389 = vunpack.c.h.b16 %v347
    %v390 = vunpack.c.l.b16 %v348
    %v391 = vunpack.c.h.b16 %v348
    %v392 = vunpack.c.l.b16 %v349
    %v393 = vunpack.c.h.b16 %v349
    %v394 = vunpack.c.l.b16 %v350
    %v395 = vunpack.c.h.b16 %v350
    %v396 = vunpack.c.l.b16 %v351
    %v397 = vunpack.c.h.b16 %v351
    %v398 = vunpack.c.l.b16 %v352
    %v399 = vunpack.c.h.b16 %v352
    %v400 = vunpack.c.l.b16 %v353
    %v401 = vunpack.c.h.b16 %v353
    %v402 = vunpack.c.l.b16 %v354
    %v403 = vunpack.c.h.b16 %v354
    %v404 = vpack.c.b16 %v374, %v372
    %v405 = vpack.c.b16 %v375, %v373
    %v406 = vpack.c.b16 %v378, %v376
    %v407 = vpack.c.b16 %v379, %v377
    %v408 = vpack.c.b16 %v382, %v380
    %v409 = vpack.c.b16 %v383, %v381
    %v410 = vpack.c.b16 %v386, %v384
    %v411 = vpack.c.b16 %v387, %v385
    %v412 = vpack.c.b16 %v390, %v388
    %v413 = vpack.c.b16 %v391, %v389
    %v414 = vpack.c.b16 %v394, %v392
    %v415 = vpack.c.b16 %v395, %v393
    %v416 = vpack.c.b16 %v398, %v396
    %v417 = vpack.c.b16 %v399, %v397
    %v418 = vpack.c.b16 %v402, %v400
    %v419 = vpack.c.b16 %v403, %v401
    %436 = vmatprep.subr.bf16.mxu0 %v419
    %437 = vmatpush1.bf16.msra.mxu0 %v418
    %438 = vmatprep.subr.bf16.mxu0 %v417
    %439 = vmatpush1.bf16.msra.mxu0 %v416
    %440 = vmatprep.subr.bf16.mxu0 %v415
    %441 = vmatpush1.bf16.msra.mxu0 %v414
    %442 = vmatprep.subr.bf16.mxu0 %v413
    %443 = vmatpush1.bf16.msra.mxu0 %v412
    %444 = vmatprep.subr.bf16.mxu0 %v411
    %445 = vmatpush1.bf16.msra.mxu0 %v410
    %446 = vmatprep.subr.bf16.mxu0 %v409
    %447 = vmatpush1.bf16.msra.mxu0 %v408
    %448 = vmatprep.subr.bf16.mxu0 %v407
    %449 = vmatpush1.bf16.msra.mxu0 %v406
    %450 = vmatprep.subr.bf16.mxu0 %v405
    %451 = vmatpush1.bf16.msra.mxu0 %v404
    %452 = vmatprep.subr.bf16.mxu0 0
    %453 = vmatpush2.bf16.msra.mxu0 0
    %454 = vmatprep.subr.bf16.mxu0 0
    %455 = vmatpush2.bf16.msra.mxu0 0
    %456 = vmatprep.subr.bf16.mxu0 0
    %457 = vmatpush2.bf16.msra.mxu0 0
    %458 = vmatprep.subr.bf16.mxu0 0
    %459 = vmatpush2.bf16.msra.mxu0 0
    %460 = vmatprep.subr.bf16.mxu0 0
    %461 = vmatpush2.bf16.msra.mxu0 0
    %462 = vmatprep.subr.bf16.mxu0 0
    %463 = vmatpush2.bf16.msra.mxu0 0
    %464 = vmatprep.subr.bf16.mxu0 0
    %465 = vmatpush2.bf16.msra.mxu0 0
    %466 = vmatprep.subr.bf16.mxu0 0
    %467 = vmatpush2.bf16.msra.mxu0 0
    %468 = vmatprep.mubr.bf16.mxu0 0
    %469 = vmatmul.mubr.bf16.gmra.mxu0 %v355
    %v470 = vpop.f32.mrf.mxu0
    %v471 = vadd.f32 0.0, %v470
    %v472 = vpop.f32.mrf.mxu0
    %v473 = vadd.f32 0.0, %v472
    %v474 = vpop.f32.mrf.mxu0
    %v475 = vpop.f32.mrf.mxu0
    %476 = vdwg.mxu0
    %v477 = vlaneseq
    %v478 = vshrl.u32 %v477, 7
    %v479 = vsub.s32 4, %v478
    %v480 = vrot.slane %v68, %v479
    %v481 = vadd.f32 %v471, %v480
    %v482 = vlaneseq
    %v483 = vshrl.u32 %v482, 7
    %v484 = vsub.s32 0, %v483
    %v485 = vrot.slane %v481, %v484
    %v486 = vsub.f32 %v481, %v485
    %v487 = vsel %vm186, %v486, 0.0
    %v488 = vrot.slane %v487, 4
    %v489 = vadd.f32 %v487, %v488
    %v490 = vrot.slane %v489, 2
    %v491 = vadd.f32 %v489, %v490
    %v492 = vrot.slane %v491, 1
    %v493 = vadd.f32 %v491, %v492
    %v494 = vmul.f32 %v493, 0.125
    %v495 = vmul.f32 %v487, %v487
    %v496 = vrot.slane %v495, 4
    %v497 = vadd.f32 %v495, %v496
    %v498 = vrot.slane %v497, 2
    %v499 = vadd.f32 %v497, %v498
    %v500 = vrot.slane %v499, 1
    %v501 = vadd.f32 %v499, %v500
    %v502 = vmul.f32 %v501, 0.125
    %v503 = vmul.f32 %v494, %v494
    %v504 = vsub.f32 %v502, %v503
    %v505 = vadd.f32 %v481, %v494
    %v506 = vadd.f32 %v504, 1e-05
    %v507 = vrsqrt.pop %v506
    %v508 = vmul.f32 %v507, %v68
    %v510 = vrot.slane %v508, 5
    %v512 = vmul.f32 %v505, %v510
    %v514 = vrot.slane %v512, 2
    %v516 = vsub.f32 %v68, %v514
    %v517 = vlaneseq
    %v518 = vshrl.u32 %v517, 7
    %v519 = vsub.s32 5, %v518
    %v520 = vrot.slane %v508, %v519
    %v521 = vmul.f32 %v481, %v520
    %v522 = vlaneseq
    %v523 = vshrl.u32 %v522, 7
    %v524 = vsub.s32 6, %v523
    %v525 = vrot.slane %v516, %v524
    %v526 = vadd.f32 %v521, %v525
    %v527 = vmax.f32 %v526, 0.0
    %s528 = scalar_lea.vmem [#allocation2], 128
    %v529 = vld [vmem:[%s528] sm:$0xf]
    %v530 = vld [vmem:[%s528 + $0x4] sm:$0xf]
    %v531 = vld [vmem:[%s528 + $0x8] sm:$0xf]
    %v532 = vld [vmem:[%s528 + $0xc] sm:$0xf]
    %v533 = vld [vmem:[%s528 + $0x10] sm:$0xf]
    %v534 = vld [vmem:[%s528 + $0x14] sm:$0xf]
    %v535 = vld [vmem:[%s528 + $0x18] sm:$0xf]
    %v536 = vld [vmem:[%s528 + $0x1c] sm:$0xf]
    %v537 = vld [vmem:[%s528 + $0x20] sm:$0xf]
    %v538 = vld [vmem:[%s528 + $0x24] sm:$0xf]
    %v539 = vld [vmem:[%s528 + $0x28] sm:$0xf]
    %v540 = vld [vmem:[%s528 + $0x2c] sm:$0xf]
    %v541 = vld [vmem:[%s528 + $0x30] sm:$0xf]
    %v542 = vld [vmem:[%s528 + $0x34] sm:$0xf]
    %v543 = vld [vmem:[%s528 + $0x38] sm:$0xf]
    %v544 = vld [vmem:[%s528 + $0x3c] sm:$0xf]
    %v545 = vpack.c.bf16 %v527, %v527
    %v546 = vlaneseq
    %v547 = vshrl.u32 %v546, 7
    %v548 = vsub.s32 7, %v547
    %v549 = vrot.slane %v68, %v548
    %v566 = vunpack.c.l.b16 %v529
    %v567 = vunpack.c.l.b16 %v530
    %v568 = vunpack.c.l.b16 %v531
    %v569 = vunpack.c.l.b16 %v532
    %v570 = vunpack.c.l.b16 %v533
    %v571 = vunpack.c.l.b16 %v534
    %v572 = vunpack.c.l.b16 %v535
    %v573 = vunpack.c.l.b16 %v536
    %v574 = vunpack.c.l.b16 %v537
    %v575 = vunpack.c.l.b16 %v538
    %v576 = vunpack.c.l.b16 %v539
    %v577 = vunpack.c.l.b16 %v540
    %v578 = vunpack.c.l.b16 %v541
    %v579 = vunpack.c.l.b16 %v542
    %v580 = vunpack.c.l.b16 %v543
    %v581 = vunpack.c.l.b16 %v544
    %v582 = vpack.c.b16 %v567, %v566
    %v583 = vpack.c.b16 %v569, %v568
    %v584 = vpack.c.b16 %v571, %v570
    %v585 = vpack.c.b16 %v573, %v572
    %v586 = vpack.c.b16 %v575, %v574
    %v587 = vpack.c.b16 %v577, %v576
    %v588 = vpack.c.b16 %v579, %v578
    %v589 = vpack.c.b16 %v581, %v580
    %598 = vmatprep.subr.bf16.mxu0 0
    %599 = vmatpush1.bf16.msra.mxu0 %v589
    %600 = vmatprep.subr.bf16.mxu0 0
    %601 = vmatpush1.bf16.msra.mxu0 %v588
    %602 = vmatprep.subr.bf16.mxu0 0
    %603 = vmatpush1.bf16.msra.mxu0 %v587
    %604 = vmatprep.subr.bf16.mxu0 0
    %605 = vmatpush1.bf16.msra.mxu0 %v586
    %606 = vmatprep.subr.bf16.mxu0 0
    %607 = vmatpush1.bf16.msra.mxu0 %v585
    %608 = vmatprep.subr.bf16.mxu0 0
    %609 = vmatpush1.bf16.msra.mxu0 %v584
    %610 = vmatprep.subr.bf16.mxu0 0
    %611 = vmatpush1.bf16.msra.mxu0 %v583
    %612 = vmatprep.subr.bf16.mxu0 0
    %613 = vmatpush1.bf16.msra.mxu0 %v582
    %614 = vmatprep.subr.bf16.mxu0 0
    %615 = vmatpush2.bf16.msra.mxu0 0
    %616 = vmatprep.subr.bf16.mxu0 0
    %617 = vmatpush2.bf16.msra.mxu0 0
    %618 = vmatprep.subr.bf16.mxu0 0
    %619 = vmatpush2.bf16.msra.mxu0 0
    %620 = vmatprep.subr.bf16.mxu0 0
    %621 = vmatpush2.bf16.msra.mxu0 0
    %622 = vmatprep.subr.bf16.mxu0 0
    %623 = vmatpush2.bf16.msra.mxu0 0
    %624 = vmatprep.subr.bf16.mxu0 0
    %625 = vmatpush2.bf16.msra.mxu0 0
    %626 = vmatprep.subr.bf16.mxu0 0
    %627 = vmatpush2.bf16.msra.mxu0 0
    %628 = vmatprep.subr.bf16.mxu0 0
    %629 = vmatpush2.bf16.msra.mxu0 0
    %630 = vmatprep.mubr.bf16.mxu0 0
    %631 = vmatmul.mubr.bf16.gmra.mxu0 %v545
    %v632 = vpop.f32.mrf.mxu0
    %v633 = vadd.f32 %v549, %v632
    %v634 = vpop.f32.mrf.mxu0
    %v635 = vpop.f32.mrf.mxu0
    %v636 = vpop.f32.mrf.mxu0
    %637 = vdwg.mxu0
    %v638 = vmax.f32 %v633, 0.0
    %639 = vst [vmem:[#allocation8] sm:$0xff] %v638
    %v640 = vlaneseq
    %v641 = vshrl.u32 %v640, 7
    %v642 = vsub.s32 0, %v641
    %v643 = vrot.slane %v69, %v642
    %v644 = vadd.f32 %v473, %v643
    %v645 = vmax.f32 %v644, 0.0
    %s646 = scalar_lea.vmem [#allocation2], 192
    %v647 = vld [vmem:[%s646] sm:$0xf]
    %v648 = vld [vmem:[%s646 + $0x4] sm:$0xf]
    %v649 = vld [vmem:[%s646 + $0x8] sm:$0xf]
    %v650 = vld [vmem:[%s646 + $0xc] sm:$0xf]
    %v651 = vld [vmem:[%s646 + $0x10] sm:$0xf]
    %v652 = vld [vmem:[%s646 + $0x14] sm:$0xf]
    %v653 = vld [vmem:[%s646 + $0x18] sm:$0xf]
    %v654 = vld [vmem:[%s646 + $0x1c] sm:$0xf]
    %v655 = vld [vmem:[%s646 + $0x20] sm:$0xf]
    %v656 = vld [vmem:[%s646 + $0x24] sm:$0xf]
    %v657 = vld [vmem:[%s646 + $0x28] sm:$0xf]
    %v658 = vld [vmem:[%s646 + $0x2c] sm:$0xf]
    %v659 = vld [vmem:[%s646 + $0x30] sm:$0xf]
    %v660 = vld [vmem:[%s646 + $0x34] sm:$0xf]
    %v661 = vld [vmem:[%s646 + $0x38] sm:$0xf]
    %v662 = vld [vmem:[%s646 + $0x3c] sm:$0xf]
    %v663 = vpack.c.bf16 %v645, %v645
    %v664 = vlaneseq
    %v665 = vshrl.u32 %v664, 7
    %v666 = vsub.s32 1, %v665
    %v667 = vrot.slane %v69, %v666
    %v684 = vunpack.c.l.b16 %v647
    %v685 = vunpack.c.l.b16 %v648
    %v686 = vunpack.c.l.b16 %v649
    %v687 = vunpack.c.l.b16 %v650
    %v688 = vunpack.c.l.b16 %v651
    %v689 = vunpack.c.l.b16 %v652
    %v690 = vunpack.c.l.b16 %v653
    %v691 = vunpack.c.l.b16 %v654
    %v692 = vunpack.c.l.b16 %v655
    %v693 = vunpack.c.l.b16 %v656
    %v694 = vunpack.c.l.b16 %v657
    %v695 = vunpack.c.l.b16 %v658
    %v696 = vunpack.c.l.b16 %v659
    %v697 = vunpack.c.l.b16 %v660
    %v698 = vunpack.c.l.b16 %v661
    %v699 = vunpack.c.l.b16 %v662
    %v700 = vpack.c.b16 %v685, %v684
    %v701 = vpack.c.b16 %v687, %v686
    %v702 = vpack.c.b16 %v689, %v688
    %v703 = vpack.c.b16 %v691, %v690
    %v704 = vpack.c.b16 %v693, %v692
    %v705 = vpack.c.b16 %v695, %v694
    %v706 = vpack.c.b16 %v697, %v696
    %v707 = vpack.c.b16 %v699, %v698
    %716 = vmatprep.subr.bf16.mxu0 0
    %717 = vmatpush1.bf16.msra.mxu0 %v707
    %718 = vmatprep.subr.bf16.mxu0 0
    %719 = vmatpush1.bf16.msra.mxu0 %v706
    %720 = vmatprep.subr.bf16.mxu0 0
    %721 = vmatpush1.bf16.msra.mxu0 %v705
    %722 = vmatprep.subr.bf16.mxu0 0
    %723 = vmatpush1.bf16.msra.mxu0 %v704
    %724 = vmatprep.subr.bf16.mxu0 0
    %725 = vmatpush1.bf16.msra.mxu0 %v703
    %726 = vmatprep.subr.bf16.mxu0 0
    %727 = vmatpush1.bf16.msra.mxu0 %v702
    %728 = vmatprep.subr.bf16.mxu0 0
    %729 = vmatpush1.bf16.msra.mxu0 %v701
    %730 = vmatprep.subr.bf16.mxu0 0
    %731 = vmatpush1.bf16.msra.mxu0 %v700
    %732 = vmatprep.subr.bf16.mxu0 0
    %733 = vmatpush2.bf16.msra.mxu0 0
    %734 = vmatprep.subr.bf16.mxu0 0
    %735 = vmatpush2.bf16.msra.mxu0 0
    %736 = vmatprep.subr.bf16.mxu0 0
    %737 = vmatpush2.bf16.msra.mxu0 0
    %738 = vmatprep.subr.bf16.mxu0 0
    %739 = vmatpush2.bf16.msra.mxu0 0
    %740 = vmatprep.subr.bf16.mxu0 0
    %741 = vmatpush2.bf16.msra.mxu0 0
    %742 = vmatprep.subr.bf16.mxu0 0
    %743 = vmatpush2.bf16.msra.mxu0 0
    %744 = vmatprep.subr.bf16.mxu0 0
    %745 = vmatpush2.bf16.msra.mxu0 0
    %746 = vmatprep.subr.bf16.mxu0 0
    %747 = vmatpush2.bf16.msra.mxu0 0
    %748 = vmatprep.mubr.bf16.mxu0 0
    %749 = vmatmul.mubr.bf16.gmra.mxu0 %v663
    %v750 = vpop.f32.mrf.mxu0
    %v751 = vadd.f32 %v667, %v750
    %v752 = vpop.f32.mrf.mxu0
    %v753 = vpop.f32.mrf.mxu0
    %v754 = vpop.f32.mrf.mxu0
    %755 = vdwg.mxu0
    %v756 = vld [vmem:[#allocation7] sm:$0xff]
    %v757 = vld [vmem:[#allocation7 + $0x8] sm:$0xff]
    %v758 = vld [vmem:[#allocation7 + $0x10] sm:$0xff]
    %v759 = vld [vmem:[#allocation7 + $0x18] sm:$0xff]
    %v760 = vld [vmem:[#allocation7 + $0x20] sm:$0xff]
    %v761 = vld [vmem:[#allocation7 + $0x28] sm:$0xff]
    %v762 = vld [vmem:[#allocation7 + $0x30] sm:$0xff]
    %v763 = vld [vmem:[#allocation7 + $0x38] sm:$0xff]
    %765 = vset.pattern.permute.xlu0 0
    %766 = vperm.xlu0 %765, %v756
    %v767 = vpop.permute.xlu0 %766
    %770 = vset.pattern.permute.xlu0 0
    %771 = vperm.xlu0 %770, %v757
    %v772 = vpop.permute.xlu0 %771
    %775 = vset.pattern.permute.xlu0 0
    %776 = vperm.xlu0 %775, %v758
    %v777 = vpop.permute.xlu0 %776
    %780 = vset.pattern.permute.xlu0 0
    %781 = vperm.xlu0 %780, %v759
    %v782 = vpop.permute.xlu0 %781
    %785 = vset.pattern.permute.xlu0 0
    %786 = vperm.xlu0 %785, %v760
    %v787 = vpop.permute.xlu0 %786
    %790 = vset.pattern.permute.xlu0 0
    %791 = vperm.xlu0 %790, %v761
    %v792 = vpop.permute.xlu0 %791
    %795 = vset.pattern.permute.xlu0 0
    %796 = vperm.xlu0 %795, %v762
    %v797 = vpop.permute.xlu0 %796
    %800 = vset.pattern.permute.xlu0 0
    %801 = vperm.xlu0 %800, %v763
    %v802 = vpop.permute.xlu0 %801
    %v804 = vadd.f32 %v751, %v767
    %v805 = vadd.f32 %v751, %v772
    %v806 = vadd.f32 %v751, %v777
    %v807 = vadd.f32 %v751, %v782
    %v808 = vadd.f32 %v751, %v787
    %v809 = vadd.f32 %v751, %v792
    %v810 = vadd.f32 %v751, %v797
    %v811 = vadd.f32 %v751, %v802
    %v812 = vrot.slane %v804, 4
    %v813 = vmax.f32 %v804, %v812
    %v814 = vrot.slane %v813, 2
    %v815 = vmax.f32 %v813, %v814
    %v816 = vrot.slane %v815, 1
    %v817 = vmax.f32 %v815, %v816
    %v818 = vrot.slane %v805, 4
    %v819 = vmax.f32 %v805, %v818
    %v820 = vrot.slane %v819, 2
    %v821 = vmax.f32 %v819, %v820
    %v822 = vrot.slane %v821, 1
    %v823 = vmax.f32 %v821, %v822
    %v824 = vrot.slane %v806, 4
    %v825 = vmax.f32 %v806, %v824
    %v826 = vrot.slane %v825, 2
    %v827 = vmax.f32 %v825, %v826
    %v828 = vrot.slane %v827, 1
    %v829 = vmax.f32 %v827, %v828
    %v830 = vrot.slane %v807, 4
    %v831 = vmax.f32 %v807, %v830
    %v832 = vrot.slane %v831, 2
    %v833 = vmax.f32 %v831, %v832
    %v834 = vrot.slane %v833, 1
    %v835 = vmax.f32 %v833, %v834
    %v836 = vrot.slane %v808, 4
    %v837 = vmax.f32 %v808, %v836
    %v838 = vrot.slane %v837, 2
    %v839 = vmax.f32 %v837, %v838
    %v840 = vrot.slane %v839, 1
    %v841 = vmax.f32 %v839, %v840
    %v842 = vrot.slane %v809, 4
    %v843 = vmax.f32 %v809, %v842
    %v844 = vrot.slane %v843, 2
    %v845 = vmax.f32 %v843, %v844
    %v846 = vrot.slane %v845, 1
    %v847 = vmax.f32 %v845, %v846
    %v848 = vrot.slane %v810, 4
    %v849 = vmax.f32 %v810, %v848
    %v850 = vrot.slane %v849, 2
    %v851 = vmax.f32 %v849, %v850
    %v852 = vrot.slane %v851, 1
    %v853 = vmax.f32 %v851, %v852
    %v854 = vrot.slane %v811, 4
    %v855 = vmax.f32 %v811, %v854
    %v856 = vrot.slane %v855, 2
    %v857 = vmax.f32 %v855, %v856
    %v858 = vrot.slane %v857, 1
    %v859 = vmax.f32 %v857, %v858
    %v860 = vxor.u32 %v817, 2147483648
    %v861 = vxor.u32 %v823, 2147483648
    %v862 = vxor.u32 %v829, 2147483648
    %v863 = vxor.u32 %v835, 2147483648
    %v864 = vxor.u32 %v841, 2147483648
    %v865 = vxor.u32 %v847, 2147483648
    %v866 = vxor.u32 %v853, 2147483648
    %v867 = vxor.u32 %v859, 2147483648
    %v868 = vmul.f32 %v860, 1.442695
    %v869 = vpow.pop %v868
    %v870 = vmul.f32 %v861, 1.442695
    %v871 = vpow.pop %v870
    %v872 = vmul.f32 %v862, 1.442695
    %v873 = vpow.pop %v872
    %v874 = vmul.f32 %v863, 1.442695
    %v875 = vpow.pop %v874
    %v876 = vmul.f32 %v864, 1.442695
    %v877 = vpow.pop %v876
    %v878 = vmul.f32 %v865, 1.442695
    %v879 = vpow.pop %v878
    %v880 = vmul.f32 %v866, 1.442695
    %v881 = vpow.pop %v880
    %v882 = vmul.f32 %v867, 1.442695
    %v883 = vpow.pop %v882
    %v884 = vadd.f32 %v869, 1.0
    %v885 = vadd.f32 %v871, 1.0
    %v886 = vadd.f32 %v873, 1.0
    %v887 = vadd.f32 %v875, 1.0
    %v888 = vadd.f32 %v877, 1.0
    %v889 = vadd.f32 %v879, 1.0
    %v890 = vadd.f32 %v881, 1.0
    %v891 = vadd.f32 %v883, 1.0
    %v892 = vrcp.pop %v884
    %v893 = vmul.f32 1.0, %v892
    %v894 = vrcp.pop %v885
    %v895 = vmul.f32 1.0, %v894
    %v896 = vrcp.pop %v886
    %v897 = vmul.f32 1.0, %v896
    %v898 = vrcp.pop %v887
    %v899 = vmul.f32 1.0, %v898
    %v900 = vrcp.pop %v888
    %v901 = vmul.f32 1.0, %v900
    %v902 = vrcp.pop %v889
    %v903 = vmul.f32 1.0, %v902
    %v904 = vrcp.pop %v890
    %v905 = vmul.f32 1.0, %v904
    %v906 = vrcp.pop %v891
    %v907 = vmul.f32 1.0, %v906
    %vm916 = vcmask 1041409
    %v917 = vsel %vm916, %v895, %v893
    %vm918 = vcmask 1042434
    %v919 = vsel %vm918, %v897, %v917
    %vm920 = vcmask 1043459
    %v921 = vsel %vm920, %v899, %v919
    %vm922 = vcmask 1044484
    %v923 = vsel %vm922, %v901, %v921
    %vm924 = vcmask 1045509
    %v925 = vsel %vm924, %v903, %v923
    %vm926 = vcmask 1046534
    %v927 = vsel %vm926, %v905, %v925
    %vm928 = vcmask 1047559
    %v929 = vsel %vm928, %v907, %v927
    %931 = vst [vmem:[%s5] sm:$0xff] %v929
    // Predicated region
    $region34: #{textnet_forward.1} parent=1 // pred_check
      _
    $region35: #{textnet_forward.1} parent=1 // pred_check_branch
      %933 = sbr.rel (0) target = $region37
    $region36: #{textnet_forward.1} parent=1 // pred_region
      _
    $region37: #{textnet_forward.1} parent=1 // pred_fallthru
      _
    // Predicated region
    $region38: #{textnet_forward.1} parent=1 // pred_check
      _
    $region39: #{textnet_forward.1} parent=1 // pred_check_branch
      %935 = sbr.rel (0) target = $region41
    $region40: #{textnet_forward.1} parent=1 // pred_region
      %s937 = ssub.s32 128, 128
      %938 = vsyncadd [#allocation4], %s937
      %s940 = sshll.u32 [#allocation8], 4
      %s941 = int_to_ptr.vmem [resolvable:$true] %s940
      %943 = dma.vmem_to_hbm [thread:$0]  %s941, 128, %s6, [#allocation4]
    $region41: #{textnet_forward.1} parent=1 // pred_fallthru
      _
    // Predicated region
    $region42: #{textnet_forward.1} parent=1 // pred_check
      _
    $region43: #{textnet_forward.1} parent=1 // pred_check_branch
      %945 = sbr.rel (0) target = $region45
    $region44: #{textnet_forward.1} parent=1 // pred_region
      _
    $region45: #{textnet_forward.1} parent=1 // pred_fallthru
      _
    // Predicated region
    $region46: #{textnet_forward.1} parent=1 // pred_check
      _
    $region47: #{textnet_forward.1} parent=1 // pred_check_branch
      %947 = sbr.rel (0) target = $region49
    $region48: #{textnet_forward.1} parent=1 // pred_region
      %948 = dma.done [#allocation4], 128
    $region49: #{textnet_forward.1} parent=1 // pred_fallthru
      _
    %949 = vsyncpa [#allocation3], 1
    %950 = vsyncpa [#allocation6], 1
    %951 = vsyncpa [#allocation4], 1

</llo_original>
